<compile_context>
chip_gen: v7x
topology: tpu7x:2x2x1
jax: 0.10.0
libtpu: 0.0.40
codegen_flags: <defaults>
</compile_context>

<pallas_src>
import functools

import jax
import jax.numpy as jnp
from jax.experimental import pallas as pl
from jax.experimental.pallas import tpu as pltpu

EPS = 1e-5  # nn.InstanceNorm2d default


def _upsample_kernel(patches_ref, w_ref, o_ref, *, p_true, tile_p):
    # patches_ref: (K, TP)      K = 9*Cin, TP = spatial tile (multiple of 128)
    # w_ref:       (TC, K)      TC = Cout tile (multiple of 8)
    # o_ref:       (TC, P_pad)  resident across the spatial grid axis
    p = pl.program_id(2)

    # Conv2d(k=3, s=2, p=1) tile as one MXU matmul, f32 accumulation.  No bias:
    # InstanceNorm subtracts the per-channel mean right after, so it cancels.
    conv = jnp.dot(w_ref[...], patches_ref[...],
                   preferred_element_type=jnp.float32)            # (TC, TP)

    col0 = pl.multiple_of(p * tile_p, tile_p)
    o_ref[:, pl.ds(col0, tile_p)] = conv

    # InstanceNorm2d (per sample & channel, biased var, no affine) + ReLU once
    # the whole conv strip for this (sample, Cout-tile) is resident in VMEM.
    @pl.when(p == pl.num_programs(2) - 1)
    def _finalize():
        y = o_ref[...]                                            # (TC, P_pad) f32
        inv_p = 1.0 / p_true
        # Padded lanes hold the conv of zero-padded patch columns (= exactly 0,
        # since there is no bias), so the plain sum equals the sum over true P.
        mean = jnp.sum(y, axis=1, keepdims=True) * inv_p
        centered = y - mean
        lane = jax.lax.broadcasted_iota(jnp.int32, y.shape, 1)
        centered = jnp.where(lane < p_true, centered, 0.0)        # mask pad lanes
        var = jnp.sum(centered * centered, axis=1, keepdims=True) * inv_p
        o_ref[...] = jnp.maximum(centered * jax.lax.rsqrt(var + EPS), 0.0)


def _round_up(x, m):
    return (x + m - 1) // m * m


def _vmem_ceiling_bytes():
    """Generation-aware usable-VMEM ceiling (~82% of physical capacity)."""
    cap = 64 << 20
    try:
        info = pltpu.get_tpu_info()
        cap = int(getattr(info, "vmem_capacity_bytes", cap) or cap)
    except Exception:
        pass
    return int(cap * 0.82)


def upsample_forward(x_nchw, w_oihw, b, scale_factor, *,
                     matmul_dtype=jnp.bfloat16):
    """x: (N, Cin, H, W) f32.  Returns (N, Cout, Ho*S, Wo*S) f32 (NCHW).

    `b` is accepted for API parity with the module but unused: InstanceNorm2d
    (affine=False) cancels a per-channel constant bias exactly."""
    del b
    N, Cin, H, W = x_nchw.shape
    Cout = w_oihw.shape[0]
    S = int(scale_factor)
    # normalize-before-replicate is exact only for integer-scale nearest mode.
    assert float(scale_factor) == float(S) and S >= 1, scale_factor

    # conv output spatial dims for k=3, s=2, p=1
    Ho = (H + 2 - 3) // 2 + 1
    Wo = (W + 2 - 3) // 2 + 1
    K, P = 9 * Cin, Ho * Wo

    # ---- Cout tiling: pad to a sublane multiple, keep 256-row MXU tiles whole.
    Cout_p = _round_up(Cout, 8)
    if Cout_p % 256 == 0:
        tc = 256
    elif Cout_p % 128 == 0:
        tc = 128
    elif Cout_p <= 256:
        tc = Cout_p
    else:
        tc = 128
        Cout_p = _round_up(Cout_p, 128)
    n_co = Cout_p // tc

    # ---- spatial tile: padding-aware VMEM accounting against the real ceiling.
    itemsize = jnp.dtype(matmul_dtype).itemsize
    sub = max(8, 32 // itemsize)            # sublane granularity: 8 f32, 16 bf16
    p128 = _round_up(P, 128)
    ceiling = _vmem_ceiling_bytes()
    out_bytes = 2 * _round_up(tc, 8) * p128 * 4             # f32, double-buffered
    w_bytes = 2 * _round_up(tc, sub) * _round_up(K, 128) * itemsize
    per_col = 2 * _round_up(K, sub) * itemsize              # patches bytes / lane col
    budget = ceiling - (4 << 20) - out_bytes - w_bytes
    if budget < per_col * 128:
        # TODO(synk): for extreme shapes also tile Cout / switch to a two-pass
        # (stats then normalize) pair of pallas_calls instead of forcing TP=128.
        tp = 128
    else:
        tp = min(p128, budget // per_col // 128 * 128)
    n_p = -(-P // tp)
    p_pad = n_p * tp

    # ---- glue: channel-first im2col (no NCHW<->NHWC transposes anywhere).
    # TODO(synk): biggest remaining lever is moving im2col in-kernel (phase-
    # decimated input + 9 accumulating matmuls) to kill this HBM round trip;
    # the bf16 cast below already halves its traffic.
    x_pad = jnp.pad(x_nchw, ((0, 0), (0, 0), (1, 1), (1, 1)))
    taps = [x_pad[:, :, kh:kh + 2 * Ho:2, kw:kw + 2 * Wo:2]
            for kh in range(3) for kw in range(3)]                # 9 x (N,Cin,Ho,Wo)
    patches = jnp.stack(taps, axis=1).reshape(N, K, P).astype(matmul_dtype)
    patches = jnp.pad(patches, ((0, 0), (0, 0), (0, p_pad - P)))  # zero pad lanes

    # weights (Cout,Cin,3,3) -> (Cout_p, 9*Cin), tap-major / cin-minor (matches
    # the tap stacking order above); padded channels are zero -> output 0.
    w_flat = jnp.transpose(w_oihw, (0, 2, 3, 1)).reshape(Cout, K)
    w_flat = jnp.pad(w_flat, ((0, Cout_p - Cout), (0, 0))).astype(matmul_dtype)

    kernel = functools.partial(_upsample_kernel, p_true=P, tile_p=tp)
    out_flat = pl.pallas_call(
        kernel,
        out_shape=jax.ShapeDtypeStruct((N, Cout_p, p_pad), jnp.float32),
        grid_spec=pltpu.PrefetchScalarGridSpec(
            num_scalar_prefetch=0,
            grid=(N, n_co, n_p),
            in_specs=[
                # TODO(synk): pipeline_mode=pl.Buffered(3) here if xprof shows the
                # patches DMA exposed and the VMEM budget has headroom.
                pl.BlockSpec((None, K, tp), lambda n, co, p: (n, 0, p)),
                pl.BlockSpec((tc, K), lambda n, co, p: (co, 0)),
                # TODO(synk): if a regime ever has tc*K >> K*P, swap the grid to
                # (co, N, p) so the weight tile is the resident operand instead.
            ],
            out_specs=pl.BlockSpec((None, tc, p_pad), lambda n, co, p: (n, co, 0)),
        ),
        compiler_params=pltpu.CompilerParams(
            # Batch axis is the megacore-sharded one (v7x): sharding co would make
            # both TensorCores DMA the same large patches blocks.
            dimension_semantics=("parallel", "arbitrary", "arbitrary"),
            vmem_limit_bytes=ceiling),
    )(patches, w_flat)

    # ---- nearest replication as a free broadcast (exact for integer S).
    # TODO(synk): fuse at least the sublane-axis (Ho->Ho*S) replication into the
    # kernel store to drop this extra XLA read+write of the conv-sized tensor.
    out = out_flat[:, :Cout, :P].reshape(N, Cout, Ho, 1, Wo, 1)
    out = jnp.broadcast_to(out, (N, Cout, Ho, S, Wo, S))
    return out.reshape(N, Cout, Ho * S, Wo * S)                   # already NCHW


def _reference(x, w, b, scale_factor):
    """Pure-JAX reference matching the PyTorch module."""
    S = int(scale_factor)
    conv = jax.lax.conv_general_dilated(
        x, w, window_strides=(2, 2), padding=((1, 1), (1, 1)),
        dimension_numbers=("NCHW", "OIHW", "NCHW"),
        precision=jax.lax.Precision.HIGHEST) + b[None, :, None, None]
    up = jnp.repeat(jnp.repeat(conv, S, axis=2), S, axis=3)
    mean = up.mean(axis=(2, 3), keepdims=True)
    var = up.var(axis=(2, 3), keepdims=True)          # biased, as in InstanceNorm2d
    return jnp.maximum((up - mean) / jnp.sqrt(var + EPS), 0.0)


if __name__ == "__main__":
    # Small deterministic setup: in_channels=4, out_channels=8, scale_factor=2
    N, Cin, H, W = 2, 4, 16, 16
    Cout, scale = 8, 2

    key = jax.random.PRNGKey(0)
    kx, kw, kb = jax.random.split(key, 3)
    x = jax.random.normal(kx, (N, Cin, H, W), dtype=jnp.float32)
    w = jax.random.normal(kw, (Cout, Cin, 3, 3), dtype=jnp.float32) * 0.1
    b = jax.random.normal(kb, (Cout,), dtype=jnp.float32) * 0.1

    ref = jax.block_until_ready(_reference(x, w, b, scale))

    # f32 MXU operands: matches the PyTorch module tightly.
    out_f32 = jax.block_until_ready(
        upsample_forward(x, w, b, scale, matmul_dtype=jnp.float32))
    assert out_f32.shape == (N, Cout, H, W), out_f32.shape
    assert jnp.allclose(out_f32, ref, atol=1e-4, rtol=1e-4), \
        float(jnp.max(jnp.abs(out_f32 - ref)))

    # default bf16 MXU operands (f32 accumulation): halves HBM traffic; checked
    # at a bf16-appropriate tolerance.
    out_bf16 = jax.block_until_ready(upsample_forward(x, w, b, scale))
    assert out_bf16.shape == (N, Cout, H, W), out_bf16.shape
    assert jnp.allclose(out_bf16, ref, atol=3e-2, rtol=3e-2), \
        float(jnp.max(jnp.abs(out_bf16 - ref)))

    print("KERNEL_OK")
</pallas_src>

<mosaic_0001>
module attributes {stable_mosaic.version = 11 : i64} {
  func.func @_upsample_kernel(%arg0: i32, %arg1: i32, %arg2: i32, %arg3: memref<1x36x128xf32, #tpu.memory_space<vmem>>, %arg4: memref<8x36xf32, #tpu.memory_space<vmem>>, %arg5: memref<1x8x128xf32, #tpu.memory_space<vmem>>) attributes {dimension_semantics = [#tpu.dimension_semantics<parallel>, #tpu.dimension_semantics<arbitrary>, #tpu.dimension_semantics<arbitrary>], iteration_bounds = array<i64: 2, 1, 1>, scalar_prefetch = 0 : i64, scratch_operands = 0 : i64, tpu.core_type = #tpu.core_type<tc>, window_params = [{transform_indices = @transform_0, window_bounds = array<i64: 1, 36, 128>}, {transform_indices = @transform_1, window_bounds = array<i64: 8, 36>}, {transform_indices = @transform_2, window_bounds = array<i64: 1, 8, 128>}]} {
    %c0 = arith.constant 0 : index
    %c0_0 = arith.constant 0 : index
    %0 = vector.load %arg4[%c0, %c0_0] : memref<8x36xf32, #tpu.memory_space<vmem>>, vector<8x36xf32>
    %c0_1 = arith.constant 0 : index
    %c0_2 = arith.constant 0 : index
    %c0_3 = arith.constant 0 : index
    %1 = vector.load %arg3[%c0_1, %c0_2, %c0_3] : memref<1x36x128xf32, #tpu.memory_space<vmem>>, vector<1x36x128xf32>
    %2 = vector.shape_cast %1 : vector<1x36x128xf32> to vector<36x128xf32>
    %cst = arith.constant dense<0.000000e+00> : vector<8x128xf32>
    %3 = tpu.matmul %0, %2, %cst {dimension_numbers = #tpu.dot_dimension_numbers<[1], [0], [0], [1], [0, 0, 1, 1], [], []>} : vector<8x36xf32>, vector<36x128xf32>, vector<8x128xf32> -> vector<8x128xf32>
    %c128_i32 = arith.constant 128 : i32
    %4 = arith.muli %arg2, %c128_i32 : i32
    %5 = tpu.assume_multiple %4, 128 : i32
    %c0_4 = arith.constant 0 : index
    %c0_5 = arith.constant 0 : index
    %6 = arith.index_cast %5 : i32 to index
    %7 = vector.load %arg5[%c0_4, %c0_5, %6] : memref<1x8x128xf32, #tpu.memory_space<vmem>>, vector<1x8x128xf32>
    %8 = vector.shape_cast %7 : vector<1x8x128xf32> to vector<8x128xf32>
    %9 = vector.shape_cast %3 : vector<8x128xf32> to vector<1x8x128xf32>
    tpu.vector_store %arg5[%c0_4, %c0_5, %6], %9 {strides = array<i32>} : memref<1x8x128xf32, #tpu.memory_space<vmem>>, vector<1x8x128xf32>,
    %c0_i32 = arith.constant 0 : i32
    %10 = arith.cmpi eq, %arg2, %c0_i32 : i32
    %11 = arith.extui %10 : i1 to i32
    %c0_i32_6 = arith.constant 0 : i32
    %12 = arith.cmpi ne, %11, %c0_i32_6 : i32
    scf.if %12 {
      %c0_7 = arith.constant 0 : index
      %c0_8 = arith.constant 0 : index
      %c0_9 = arith.constant 0 : index
      %13 = vector.load %arg5[%c0_7, %c0_8, %c0_9] : memref<1x8x128xf32, #tpu.memory_space<vmem>>, vector<1x8x128xf32>
      %14 = vector.shape_cast %13 : vector<1x8x128xf32> to vector<8x128xf32>
      %cst_10 = arith.constant dense<0.000000e+00> : vector<8xf32>
      %15 = vector.multi_reduction <add>, %14, %cst_10 [1] : vector<8x128xf32> to vector<8xf32>
      %16 = vector.shape_cast %15 : vector<8xf32> to vector<8x1xf32>
      %cst_11 = arith.constant 1.562500e-02 : f32
      %17 = vector.broadcast %cst_11 : f32 to vector<8x1xf32>
      %18 = arith.mulf %16, %17 : vector<8x1xf32>
      %19 = vector.broadcast %18 : vector<8x1xf32> to vector<8x128xf32>
      %20 = arith.subf %14, %19 : vector<8x128xf32>
      %21 = tpu.iota {dimensions = array<i32: 1>} : vector<8x128xi32>
      %c64_i32 = arith.constant 64 : i32
      %22 = vector.broadcast %c64_i32 : i32 to vector<8x128xi32>
      %23 = arith.cmpi slt, %21, %22 : vector<8x128xi32>
      %cst_12 = arith.constant 0.000000e+00 : f32
      %24 = vector.broadcast %cst_12 : f32 to vector<8x128xf32>
      %25 = arith.select %23, %20, %24 : vector<8x128xi1>, vector<8x128xf32>
      %26 = arith.mulf %25, %25 : vector<8x128xf32>
      %cst_13 = arith.constant dense<0.000000e+00> : vector<8xf32>
      %27 = vector.multi_reduction <add>, %26, %cst_13 [1] : vector<8x128xf32> to vector<8xf32>
      %28 = vector.shape_cast %27 : vector<8xf32> to vector<8x1xf32>
      %cst_14 = arith.constant 1.562500e-02 : f32
      %29 = vector.broadcast %cst_14 : f32 to vector<8x1xf32>
      %30 = arith.mulf %28, %29 : vector<8x1xf32>
      %cst_15 = arith.constant 9.99999974E-6 : f32
      %31 = vector.broadcast %cst_15 : f32 to vector<8x1xf32>
      %32 = arith.addf %30, %31 : vector<8x1xf32>
      %33 = math.rsqrt %32 : vector<8x1xf32>
      %34 = vector.broadcast %33 : vector<8x1xf32> to vector<8x128xf32>
      %35 = arith.mulf %25, %34 : vector<8x128xf32>
      %cst_16 = arith.constant 0.000000e+00 : f32
      %36 = vector.broadcast %cst_16 : f32 to vector<8x128xf32>
      %37 = arith.maximumf %35, %36 : vector<8x128xf32>
      %c0_17 = arith.constant 0 : index
      %c0_18 = arith.constant 0 : index
      %c0_19 = arith.constant 0 : index
      %38 = vector.load %arg5[%c0_17, %c0_18, %c0_19] : memref<1x8x128xf32, #tpu.memory_space<vmem>>, vector<1x8x128xf32>
      %39 = vector.shape_cast %38 : vector<1x8x128xf32> to vector<8x128xf32>
      %40 = vector.shape_cast %37 : vector<8x128xf32> to vector<1x8x128xf32>
      tpu.vector_store %arg5[%c0_17, %c0_18, %c0_19], %40 {strides = array<i32>} : memref<1x8x128xf32, #tpu.memory_space<vmem>>, vector<1x8x128xf32>,
    } else {
    }
    return
  }
  func.func @transform_0(%arg0: i32, %arg1: i32, %arg2: i32) -> (i32, i32, i32) {
    %c0_i32 = arith.constant 0 : i32
    %c0_i32_0 = arith.constant 0 : i32
    return %arg0, %c0_i32, %arg2 : i32, i32, i32
  }
  func.func @transform_1(%arg0: i32, %arg1: i32, %arg2: i32) -> (i32, i32) {
    %c0_i32 = arith.constant 0 : i32
    %c0_i32_0 = arith.constant 0 : i32
    return %arg1, %c0_i32 : i32, i32
  }
  func.func @transform_2(%arg0: i32, %arg1: i32, %arg2: i32) -> (i32, i32, i32) {
    %c0_i32 = arith.constant 0 : i32
    %c0_i32_0 = arith.constant 0 : i32
    return %arg0, %arg1, %c0_i32 : i32, i32, i32
  }
}

</mosaic_0001>

<llo_original>
// kernel: tpu_custom_call.1
$region0: #{tpu_custom_call.1}
  #allocation0 [shape = 'u32[]', space=smem, size = 0x4, offset = 0x4, fixed_abs, tag = 'smem constant byte address 0x4 - core index']
  #allocation1 [shape = 'u32[144,128]{1,0:T(1,128)}', space=vmem, size = 0x12000, scoped, tag = 'internal scratch']
  %s0 = inlined_call_operand.vmem [shape: f32[2,36,128], index: 0, kind: input, shape index: {}]
  %s1 = inlined_call_operand.vmem [shape: f32[8,36], index: 1, kind: input, shape index: {}]
  %s2 = inlined_call_operand.hbm [shape: f32[2,8,128], index: 2, kind: output, shape index: {}]
  %s3 = sld [smem:[#allocation0]]
  $region45: #{tpu_custom_call.1} parent=0
    _
  %s5 = ssub.s32 1, %s3
  %s6 = scalar_select 0, %s5, %s3
  $region1: #{tpu_custom_call.1} parent=0
    #allocation2 [shape = 'u8[8192]{0}', space=vmem, size = 0x2000, scoped, tag = 'output window, operand 0']
    #allocation3 [shape = 's32[2]{0}', space=sflag, size = 0x8, scoped, tag = 'scoped memory for tpu_custom_call.1']
    %7 = vsyncpa [#allocation3], 0
    %s8 = scalar_lea.sflag [#allocation3], 1
    %9 = vsyncpa %s8, 0
    loop: start=0, step=1, limit=4
    $region2: #{tpu_custom_call.1} parent=1 // loop_pre_header
      _
    $region3: #{tpu_custom_call.1} parent=1 // loop_header
      %s11 = sphi 0, %s15
      %p12 = scmp.ge.s32.totalorder %s11, 4
      %s18 = sphi 0, %s37
      %s19 = sphi 0, %s33
      %s20 = sphi 0, %s29
      %s21 = sphi 0, %s18
      %s22 = sphi 0, %s19
      %s23 = sphi 0, %s20
      %s24 = sphi 0, %s21
      %s25 = sphi 0, %s22
      %s26 = sphi 0, %s23
      %s42 = sphi 0, %s44
      %s45 = sphi 0, %s42
      %s46 = sphi 0, %s45
      %s62 = sphi 0, %s46
      %s68 = sphi 0, %s70
      %s71 = sphi 0, %s68
      %s72 = sphi 0, %s71
      %s88 = sphi 0, %s72
      %s96 = sphi 0, %s98
      %s99 = sphi 0, %s96
      %s100 = sphi 0, %s99
      %s116 = sphi 0, %s100
    $region4: #{tpu_custom_call.1} parent=1 // loop_header_branch
      %14 = sbr.rel (%p12) target = $region8
    $region5: #{tpu_custom_call.1} parent=1 // loop_body
      %s16 = ssub.s32 %s11, 1
      %s17 = ssub.s32 %s11, 2
      %s27 = sadd.s32 1, %s20
      %p28 = scmp.ge.s32.totalorder %s27, 1
      %s29 = scalar_select %p28, 0, %s27
      %s30 = sadd.s32 1, %s19
      %s31 = scalar_select %p28, %s30, %s19
      %p32 = scmp.ge.s32.totalorder %s31, 1
      %s33 = scalar_select %p32, 0, %s31
      %s34 = sadd.s32 1, %s18
      %s35 = scalar_select %p32, %s34, %s18
      %p36 = scmp.ge.s32.totalorder %s35, 2
      %s37 = scalar_select %p36, 0, %s35
      %s38 = ssub.s32 %s18, %s37
      %s39 = ssub.s32 %s20, %s29
      %s40 = sor.u32 %s38, %s39
      %p41 = scmp.eq.s32.totalorder %s40, 0
      %s43 = sadd.s32 %s42, 1
      %s44 = scalar_select %p41, %s42, %s43
      %p47 = pneg %p41
      %p48 = scmp.eq.s32.totalorder %s11, 1
      %p49 = por %p47, %p48
      %p50 = scmp.ne.s32.totalorder %s42, %s45
      %p51 = scmp.eq.s32.totalorder %s11, 0
      %p52 = por %p50, %p51
      %p53 = scmp.ne.s32.totalorder %s42, %s45
      %p54 = scmp.eq.s32.totalorder %s16, 1
      %p55 = por %p53, %p54
      %p56 = scmp.ne.s32.totalorder %s45, %s46
      %p57 = scmp.eq.s32.totalorder %s16, 0
      %p58 = por %p56, %p57
      %p59 = scmp.ne.s32.totalorder %s45, %s46
      %p60 = scmp.eq.s32.totalorder %s17, 1
      %p61 = por %p59, %p60
      %p63 = scmp.ne.s32.totalorder %s46, %s62
      %p64 = scmp.eq.s32.totalorder %s17, 0
      %p65 = por %p63, %p64
      %s66 = ssub.s32 %s19, %s33
      %p67 = scmp.eq.s32.totalorder %s66, 0
      %s69 = sadd.s32 %s68, 1
      %s70 = scalar_select %p67, %s68, %s69
      %p73 = pneg %p67
      %p74 = scmp.eq.s32.totalorder %s11, 1
      %p75 = por %p73, %p74
      %p76 = scmp.ne.s32.totalorder %s68, %s71
      %p77 = scmp.eq.s32.totalorder %s11, 0
      %p78 = por %p76, %p77
      %p79 = scmp.ne.s32.totalorder %s68, %s71
      %p80 = scmp.eq.s32.totalorder %s16, 1
      %p81 = por %p79, %p80
      %p82 = scmp.ne.s32.totalorder %s71, %s72
      %p83 = scmp.eq.s32.totalorder %s16, 0
      %p84 = por %p82, %p83
      %p85 = scmp.ne.s32.totalorder %s71, %s72
      %p86 = scmp.eq.s32.totalorder %s17, 1
      %p87 = por %p85, %p86
      %p89 = scmp.ne.s32.totalorder %s72, %s88
      %p90 = scmp.eq.s32.totalorder %s17, 0
      %p91 = por %p89, %p90
      %s92 = ssub.s32 %s18, %s37
      %s93 = ssub.s32 %s19, %s33
      %s94 = sor.u32 %s92, %s93
      %p95 = scmp.eq.s32.totalorder %s94, 0
      %s97 = sadd.s32 %s96, 1
      %s98 = scalar_select %p95, %s96, %s97
      %p101 = pneg %p95
      %p102 = scmp.eq.s32.totalorder %s11, 1
      %p103 = por %p101, %p102
      %p104 = scmp.ne.s32.totalorder %s96, %s99
      %p105 = scmp.eq.s32.totalorder %s11, 0
      %p106 = por %p104, %p105
      %p107 = scmp.ne.s32.totalorder %s96, %s99
      %p108 = scmp.eq.s32.totalorder %s16, 1
      %p109 = por %p107, %p108
      %p110 = scmp.ne.s32.totalorder %s99, %s100
      %p111 = scmp.eq.s32.totalorder %s16, 0
      %p112 = por %p110, %p111
      %p113 = scmp.ne.s32.totalorder %s99, %s100
      %p114 = scmp.eq.s32.totalorder %s17, 1
      %p115 = por %p113, %p114
      %p117 = scmp.ne.s32.totalorder %s100, %s116
      %p118 = scmp.eq.s32.totalorder %s17, 0
      %p119 = por %p117, %p118
      %p120 = scmp.le.s32.totalorder 1, %s11
      %p121 = scmp.lt.s32.totalorder %s11, 3
      %p122 = pnand %p120, %p121
      %p123 = pneg %p122
      // Predicated region
      $region9: #{tpu_custom_call.1} parent=5 // pred_check
        _
      $region10: #{tpu_custom_call.1} parent=5 // pred_check_branch
        %125 = sbr.rel (%p122) target = $region12
      $region11: #{tpu_custom_call.1} parent=5 // pred_region
        %s126 = ssub.s32 %s11, 1
        // Predicated region
        $region13: #{tpu_custom_call.1} parent=11 // pred_check
          %p127 = pneg %p84
        $region14: #{tpu_custom_call.1} parent=11 // pred_check_branch
          %129 = sbr.rel (%p127) target = $region16
        $region15: #{tpu_custom_call.1} parent=11 // pred_region
          %p130 = scmp.lt.s32.totalorder %s22, 0
          %s131 = scalar_select %p130, %s22, 0
          %s132 = smul.addr %s131, 8
          %s133 = scalar_lea.vmem %s1, %s132
        $region16: #{tpu_custom_call.1} parent=11 // pred_fallthru
          _
      $region12: #{tpu_custom_call.1} parent=5 // pred_fallthru
        _
      %p134 = scmp.lt.s32.totalorder %s11, 2
      // Predicated region
      $region17: #{tpu_custom_call.1} parent=5 // pred_check
        %p135 = pneg %p134
      $region18: #{tpu_custom_call.1} parent=5 // pred_check_branch
        %137 = sbr.rel (%p135) target = $region20
      $region19: #{tpu_custom_call.1} parent=5 // pred_region
        // Predicated region
        $region21: #{tpu_custom_call.1} parent=19 // pred_check
          %p138 = pneg %p52
        $region22: #{tpu_custom_call.1} parent=19 // pred_check_branch
          %140 = sbr.rel (%p138) target = $region24
        $region23: #{tpu_custom_call.1} parent=19 // pred_region
          %p141 = scmp.lt.s32.totalorder %s18, 1
          %s142 = scalar_select %p141, %s18, 1
          %p143 = scmp.lt.s32.totalorder %s20, 0
          %s144 = scalar_select %p143, %s20, 0
          %s145 = smul.addr %s142, 5
          %s146 = sadd.s32 %s144, %s145
          %s147 = smul.addr %s146, 8
          %s148 = scalar_lea.vmem %s0, %s147
        $region24: #{tpu_custom_call.1} parent=19 // pred_fallthru
          _
      $region20: #{tpu_custom_call.1} parent=5 // pred_fallthru
        _
      %p149 = scmp.le.s32.totalorder 1, %s11
      %p150 = scmp.lt.s32.totalorder %s11, 3
      %p151 = pnand %p149, %p150
      %p152 = pneg %p151
      // Predicated region
      $region25: #{tpu_custom_call.1} parent=5 // pred_check
        _
      $region26: #{tpu_custom_call.1} parent=5 // pred_check_branch
        %154 = sbr.rel (%p151) target = $region28
      $region27: #{tpu_custom_call.1} parent=5 // pred_region
        %s155 = ssub.s32 %s11, 1
        %p156 = scmp.lt.s32.totalorder %s21, 1
        %s157 = scalar_select %p156, %s21, 1
        %p158 = scmp.lt.s32.totalorder %s23, 0
        %s159 = scalar_select %p158, %s23, 0
        %s160 = smul.addr %s157, 5
        %s161 = sadd.s32 %s159, %s160
        %s162 = smul.addr %s161, 8
        %s163 = scalar_lea.vmem %s0, %s162
        %p164 = pneg %p58
        %p165 = pneg %p55
        %p166 = scmp.lt.s32.totalorder %s22, 0
        %s167 = scalar_select %p166, %s22, 0
        %s168 = smul.addr %s167, 8
        %s169 = scalar_lea.vmem %s1, %s168
        %p170 = pneg %p84
        %p171 = pneg %p81
        %p172 = pneg %p112
        %p173 = pneg %p109
        %s174 = sand.u32 %s99, 1
        %s175 = scalar_lea.sflag [#allocation3], %s174
        %s176 = sand.u32 %s99, 1
        %s177 = smul.addr %s176, 8
        %s178 = scalar_lea.vmem [#allocation2], %s177
        %p179 = scmp.lt.s32.totalorder %s21, 1
        %s180 = scalar_select %p179, %s21, 1
        %p181 = scmp.lt.s32.totalorder %s23, 0
        %s182 = scalar_select %p181, %s23, 0
        %s183 = smul.addr %s180, 5
        %s184 = sadd.s32 %s182, %s183
        %s185 = smul.addr %s184, 8
        %s186 = scalar_lea.vmem %s0, %s185
        %p187 = scmp.lt.s32.totalorder %s22, 0
        %s188 = scalar_select %p187, %s22, 0
        %s189 = smul.addr %s188, 8
        %s190 = scalar_lea.vmem %s1, %s189
        %v191 = vld [vmem:[%s190] sm:$0xff]
        %v192 = vld [vmem:[%s186] sm:$0xff]
        %v193 = vld [vmem:[%s186 + $0x8] sm:$0xff]
        %v194 = vld [vmem:[%s186 + $0x10] sm:$0xff]
        %v195 = vld [vmem:[%s186 + $0x18] sm:$0xff]
        %v196 = vld [vmem:[%s186 + $0x20] sm:$0xf]
        %vm197 = vcmask 293888
        %v199 = vsel %vm197, %v191, 0
        %vm201 = vcmask 1043456
        %v203 = vsel %vm201, %v196, 0
        %205 = vmatprep.subr.mxu0 0.0
        %206 = vmatpush1.msra.mxu0 %v192
        %207 = vmatprep.subr.mxu0 0.0
        %208 = vmatpush1.msra.mxu0 %v193
        %209 = vmatprep.subr.mxu0 0.0
        %210 = vmatpush1.msra.mxu0 %v194
        %211 = vmatprep.subr.mxu0 0.0
        %212 = vmatpush1.msra.mxu0 %v195
        %213 = vmatprep.subr.mxu0 0.0
        %214 = vmatpush1.msra.mxu0 %v203
        %215 = vmatprep.subr.mxu0 0.0
        %216 = vmatpush1.msra.mxu0 0.0
        %217 = vmatprep.subr.mxu0 0.0
        %218 = vmatpush1.msra.mxu0 0.0
        %219 = vmatprep.subr.mxu0 0.0
        %220 = vmatpush1.msra.mxu0 0.0
        %221 = vmatprep.subr.mxu0 0.0
        %222 = vmatpush1.msra.mxu0 0.0
        %223 = vmatprep.subr.mxu0 0.0
        %224 = vmatpush1.msra.mxu0 0.0
        %225 = vmatprep.subr.mxu0 0.0
        %226 = vmatpush1.msra.mxu0 0.0
        %227 = vmatprep.subr.mxu0 0.0
        %228 = vmatpush1.msra.mxu0 0.0
        %229 = vmatprep.subr.mxu0 0.0
        %230 = vmatpush1.msra.mxu0 0.0
        %231 = vmatprep.subr.mxu0 0.0
        %232 = vmatpush1.msra.mxu0 0.0
        %233 = vmatprep.subr.mxu0 0.0
        %234 = vmatpush1.msra.mxu0 0.0
        %235 = vmatprep.subr.mxu0 0.0
        %236 = vmatpush1.msra.mxu0 0.0
        %237 = vmatprep.subr.mxu0 0.0
        %238 = vmatpush1.msra.mxu0 0.0
        %239 = vmatprep.subr.mxu0 0.0
        %240 = vmatpush1.msra.mxu0 0.0
        %241 = vmatprep.subr.mxu0 0.0
        %242 = vmatpush1.msra.mxu0 0.0
        %243 = vmatprep.subr.mxu0 0.0
        %244 = vmatpush1.msra.mxu0 0.0
        %245 = vmatprep.subr.mxu0 0.0
        %246 = vmatpush1.msra.mxu0 0.0
        %247 = vmatprep.subr.mxu0 0.0
        %248 = vmatpush1.msra.mxu0 0.0
        %249 = vmatprep.subr.mxu0 0.0
        %250 = vmatpush1.msra.mxu0 0.0
        %251 = vmatprep.subr.mxu0 0.0
        %252 = vmatpush1.msra.mxu0 0.0
        %253 = vmatprep.subr.mxu0 0.0
        %254 = vmatpush1.msra.mxu0 0.0
        %255 = vmatprep.subr.mxu0 0.0
        %256 = vmatpush1.msra.mxu0 0.0
        %257 = vmatprep.subr.mxu0 0.0
        %258 = vmatpush1.msra.mxu0 0.0
        %259 = vmatprep.subr.mxu0 0.0
        %260 = vmatpush1.msra.mxu0 0.0
        %261 = vmatprep.subr.mxu0 0.0
        %262 = vmatpush1.msra.mxu0 0.0
        %263 = vmatprep.subr.mxu0 0.0
        %264 = vmatpush1.msra.mxu0 0.0
        %265 = vmatprep.subr.mxu0 0.0
        %266 = vmatpush1.msra.mxu0 0.0
        %267 = vmatprep.subr.mxu0 0.0
        %268 = vmatpush1.msra.mxu0 0.0
        %269 = vmatprep.mubr.f32.mxu0 0.0
        %270 = vmatmul.mubr.f32.gmra.mrb[0].mxu0 %v199
        %v271 = vpop.f32.mrb[0].mxu0
        %v272 = vadd.f32 0.0, %v271
        %v273 = vpop.f32.mrb[0].mxu0
        %274 = vdwg.mxu0
        %s275 = smul.u32 %s23, 128
        %s276 = sshra.s32 %s275, 7
        %s277 = sand.u32 %s275, 127
        %s278 = scalar_lea.vmem %s178, %s276 [#allocation2]
        %279 = vst [vmem:[%s278] sm:$0xff] %v272
        %p280 = scmp.eq.s32.totalorder %s23, 0
        // Predicated region
        $region29: #{tpu_custom_call.1} parent=27 // pred_check
          %p281 = pneg %p280
        $region30: #{tpu_custom_call.1} parent=27 // pred_check_branch
          %283 = sbr.rel (%p281) target = $region32
        $region31: #{tpu_custom_call.1} parent=27 // pred_region
          %v284 = vld [vmem:[%s178] sm:$0xff]
          %285 = vadd.xlane.f32.xlu0 %v284
          %v286 = vpop.xlane.xlu0 %285
          %v287 = vmul.f32 %v286, 0.015625
          %v288 = vsub.f32 %v284, %v287
          %v289 = vlaneseq
          %v290 = vand.u32 %v289, 127
          %vm291 = vcmp.lt.s32.totalorder %v290, 64
          %v292 = vsel %vm291, %v288, 0.0
          %v293 = vmul.f32 %v292, %v292
          %294 = vadd.xlane.f32.xlu0 %v293
          %v295 = vpop.xlane.xlu0 %294
          %v296 = vmul.f32 %v295, 0.015625
          %v297 = vadd.f32 %v296, 1e-05
          %v298 = vrsqrt.pop %v297
          %v299 = vmul.f32 %v292, %v298
          %v300 = vmax.f32 %v299, 0.0
          %301 = vst [vmem:[%s178] sm:$0xff] %v300
        $region32: #{tpu_custom_call.1} parent=27 // pred_fallthru
          _
        %s302 = sand.u32 %s99, 1
        %s303 = scalar_lea.sflag [#allocation3], %s302
        %s304 = sand.u32 %s99, 1
        %s305 = smul.addr %s304, 8
        %s306 = scalar_lea.vmem [#allocation2], %s305
        // Predicated region
        $region33: #{tpu_custom_call.1} parent=27 // pred_check
          %p307 = pneg %p109
        $region34: #{tpu_custom_call.1} parent=27 // pred_check_branch
          %309 = sbr.rel (%p307) target = $region36
        $region35: #{tpu_custom_call.1} parent=27 // pred_region
          %s311 = ssub.s32 128, 128
          %312 = vsyncadd %s303, %s311
          %s313 = sadd.s32 %s22, %s21
          %s314 = smul.addr %s313, 128
          %s315 = scalar_lea.hbm %s2, %s314
          %s317 = sshll.u32 %s306, 4
          %s318 = int_to_ptr.vmem [resolvable:$true] %s317
          %320 = dma.vmem_to_hbm [thread:$0]  %s318, 128, %s315, %s303
        $region36: #{tpu_custom_call.1} parent=27 // pred_fallthru
          _
      $region28: #{tpu_custom_call.1} parent=5 // pred_fallthru
        _
      %p321 = scmp.le.s32.totalorder 2, %s11
      // Predicated region
      $region37: #{tpu_custom_call.1} parent=5 // pred_check
        %p322 = pneg %p321
      $region38: #{tpu_custom_call.1} parent=5 // pred_check_branch
        %324 = sbr.rel (%p322) target = $region40
      $region39: #{tpu_custom_call.1} parent=5 // pred_region
        %s325 = ssub.s32 %s11, 2
        // Predicated region
        $region41: #{tpu_custom_call.1} parent=39 // pred_check
          %p326 = pneg %p115
        $region42: #{tpu_custom_call.1} parent=39 // pred_check_branch
          %328 = sbr.rel (%p326) target = $region44
        $region43: #{tpu_custom_call.1} parent=39 // pred_region
          %s329 = sand.u32 %s100, 1
          %s330 = scalar_lea.sflag [#allocation3], %s329
          %s331 = sand.u32 %s100, 1
          %s332 = smul.addr %s331, 8
          %s333 = scalar_lea.vmem [#allocation2], %s332
          %334 = dma.done %s330, 128
        $region44: #{tpu_custom_call.1} parent=39 // pred_fallthru
          _
      $region40: #{tpu_custom_call.1} parent=5 // pred_fallthru
        _
    $region6: #{tpu_custom_call.1} parent=1 // loop_footer
      %s15 = sadd.s32 1, %s11
    $region7: #{tpu_custom_call.1} parent=1 // loop_footer_branch
      %10 = sbr.rel target = $region3
    $region8: #{tpu_custom_call.1} parent=1 // loop_exit
      _
    %335 = vsyncpa [#allocation3], 1
    %s336 = scalar_lea.sflag [#allocation3], 1
    %337 = vsyncpa %s336, 1

</llo_original>
